<compile_context>
chip_gen: v7x
topology: tpu7x:2x2x1
jax: 0.10.0
libtpu: 0.0.40
codegen_flags: <defaults>
</compile_context>

<pallas_src>
import functools

import jax
import jax.numpy as jnp
from jax import lax
from jax.experimental import pallas as pl
from jax.experimental.pallas import tpu as pltpu


def _round_up(v, m):
    return ((v + m - 1) // m) * m


def _lookahead_kernel(w_ref, x_ref, halo_ref, o_ref, *, seq_len, kmax):
    """One (Tb, Lb) output tile of the depthwise lookahead conv.

    w_ref:    (ctx, Lb) per-lane filter taps (feature weights tiled over batch)
    x_ref:    (Tb, Lb)  rows [i*Tb, i*Tb + Tb) of the flattened (T, N*C) input
    halo_ref: (Hb, Lb)  rows [i*Tb + Tb, i*Tb + Tb + Hb) (the lookahead halo)
    o_ref:    (Tb, Lb)
    """
    i = pl.program_id(0)
    tb = x_ref.shape[0]
    hb = halo_ref.shape[0]
    t0 = i * tb

    # Zero every row at/after seq_len: this is simultaneously the conv's right
    # zero-padding and the guard for garbage rows of partial/clamped boundary
    # blocks (jnp.where selects, so garbage never propagates).
    row_m = lax.broadcasted_iota(jnp.int32, (tb, 1), 0)
    row_h = lax.broadcasted_iota(jnp.int32, (hb, 1), 0)
    cur = jnp.where(t0 + row_m < seq_len, x_ref[...], 0.0)
    halo = jnp.where(t0 + tb + row_h < seq_len, halo_ref[...], 0.0)
    xx = jnp.concatenate([cur, halo], axis=0)            # (Tb + Hb, Lb)

    w = w_ref[...]                                       # (ctx, Lb)
    acc = w[0:1, :] * xx[0:tb, :]
    for k in range(1, kmax):                             # ctx is small & static
        acc = acc + w[k:k + 1, :] * xx[k:k + tb, :]
    o_ref[...] = acc.astype(o_ref.dtype)


def lookahead_forward(x, weight, *, block_t=128, block_l=2048):
    """Lookahead forward.

    x:      (T, N, C)  seq-first activations (PyTorch layout)
    weight: (C, context) = conv.weight[:, 0, :]  (depthwise Conv1d, no bias)
    """
    T, N, C = x.shape
    Cw, ctx = weight.shape
    assert Cw == C and ctx > 0
    NC = N * C

    x2 = x.reshape(T, NC)                                 # free, lane-dense view
    # Lane j = n*C + c uses filter tap weight[c, k]; tile taps over the batch.
    w2 = jnp.broadcast_to(weight.T[:, None, :], (ctx, N, C)).reshape(ctx, NC)

    # --- time tiling: Tb main rows per block + small 8-aligned halo of Hb rows.
    Hb = max(8, _round_up(ctx - 1, 8))
    Tb = _round_up(block_t, Hb)               # Hb | Tb so halo blocks stay aligned
    if Tb >= T:
        Tb = T                                # single time block (full-dim block is legal)
    nb_t = pl.cdiv(T, Tb)
    Hb = min(Hb, T)                           # keep the halo block shape legal
    nb_h = pl.cdiv(T, Hb)
    stride = Tb // Hb                         # exact whenever nb_t > 1
    kmax = min(ctx, Hb + 1)                   # taps past the halo only touch zero padding

    # --- lane tiling (block_l is a multiple of 128 -> unmasked stores).
    Lb = NC if NC <= block_l else block_l
    nb_l = pl.cdiv(NC, Lb)

    kernel = functools.partial(_lookahead_kernel, seq_len=T, kmax=kmax)

    out = pl.pallas_call(
        kernel,
        out_shape=jax.ShapeDtypeStruct((T, NC), x.dtype),
        grid_spec=pltpu.PrefetchScalarGridSpec(
            num_scalar_prefetch=0,
            grid=(nb_t, nb_l),
            in_specs=[
                pl.BlockSpec((ctx, Lb), lambda i, j: (0, j)),        # filter taps
                pl.BlockSpec((Tb, Lb), lambda i, j: (i, j)),         # main rows
                pl.BlockSpec(                                        # lookahead halo
                    (Hb, Lb),
                    lambda i, j: (jnp.minimum((i + 1) * stride, nb_h - 1), j)),
            ],
            out_specs=pl.BlockSpec((Tb, Lb), lambda i, j: (i, j)),
        ),
        compiler_params=pltpu.CompilerParams(
            dimension_semantics=("parallel", "parallel")),
    )(w2, x2, x2)
    return out.reshape(T, N, C)


# ----------------------------------------------------------------------------
# Pure-JAX reference (exact PyTorch Lookahead math) for a self-check.
# ----------------------------------------------------------------------------
def _reference(x, weight):
    T, N, C = x.shape
    ctx = weight.shape[1]
    xp = jnp.concatenate([x, jnp.zeros((ctx - 1, N, C), x.dtype)], axis=0)
    y = jnp.zeros_like(x)
    for k in range(ctx):
        y = y + xp[k:k + T] * weight[None, None, :, k]
    return y


if __name__ == "__main__":
    key = jax.random.PRNGKey(0)
    k1, k2, k3, k4 = jax.random.split(key, 4)

    # Small config (single time block): T=16, N=4, C=32 (N*C = 128 lanes), context=7.
    T, N, C, ctx = 16, 4, 32, 7
    x = jax.random.normal(k1, (T, N, C), jnp.float32)
    w = jax.random.normal(k2, (C, ctx), jnp.float32) / ctx
    out = jax.block_until_ready(lookahead_forward(x, w))
    ref = jax.block_until_ready(_reference(x, w))
    assert out.shape == (T, N, C), out.shape
    assert float(jnp.max(jnp.abs(out - ref))) < 1e-4, float(jnp.max(jnp.abs(out - ref)))

    # Multi-block config exercising the halo stream + partial last time block.
    T2, N2, C2, ctx2 = 40, 4, 32, 7
    x2 = jax.random.normal(k3, (T2, N2, C2), jnp.float32)
    w2 = jax.random.normal(k4, (C2, ctx2), jnp.float32) / ctx2
    out2 = jax.block_until_ready(lookahead_forward(x2, w2, block_t=16))
    ref2 = jax.block_until_ready(_reference(x2, w2))
    assert out2.shape == (T2, N2, C2), out2.shape
    assert float(jnp.max(jnp.abs(out2 - ref2))) < 1e-4, float(jnp.max(jnp.abs(out2 - ref2)))

    print("KERNEL_OK")
</pallas_src>

<mosaic_0001>
module attributes {stable_mosaic.version = 11 : i64} {
  func.func @_lookahead_kernel(%arg0: i32, %arg1: i32, %arg2: memref<7x128xf32, #tpu.memory_space<vmem>>, %arg3: memref<16x128xf32, #tpu.memory_space<vmem>>, %arg4: memref<8x128xf32, #tpu.memory_space<vmem>>, %arg5: memref<16x128xf32, #tpu.memory_space<vmem>>) attributes {dimension_semantics = [#tpu.dimension_semantics<parallel>, #tpu.dimension_semantics<parallel>], iteration_bounds = array<i64: 1, 1>, scalar_prefetch = 0 : i64, scratch_operands = 0 : i64, tpu.core_type = #tpu.core_type<tc>, window_params = [{transform_indices = @transform_0, window_bounds = array<i64: 7, 128>}, {transform_indices = @transform_1, window_bounds = array<i64: 16, 128>}, {transform_indices = @transform_2, window_bounds = array<i64: 8, 128>}, {transform_indices = @transform_3, window_bounds = array<i64: 16, 128>}]} {
    %c16_i32 = arith.constant 16 : i32
    %0 = arith.muli %arg0, %c16_i32 : i32
    %1 = tpu.iota {dimensions = array<i32: 0>} : vector<16x1xi32>
    %2 = tpu.iota {dimensions = array<i32: 0>} : vector<8x1xi32>
    %3 = vector.broadcast %0 : i32 to vector<16x1xi32>
    %4 = arith.addi %3, %1 : vector<16x1xi32>
    %c16_i32_0 = arith.constant 16 : i32
    %5 = vector.broadcast %c16_i32_0 : i32 to vector<16x1xi32>
    %6 = arith.cmpi slt, %4, %5 : vector<16x1xi32>
    %c0 = arith.constant 0 : index
    %c0_1 = arith.constant 0 : index
    %7 = vector.load %arg3[%c0, %c0_1] : memref<16x128xf32, #tpu.memory_space<vmem>>, vector<16x128xf32>
    %cst = arith.constant 0.000000e+00 : f32
    %8 = vector.shape_cast %6 : vector<16x1xi1> to vector<16x1xi1>
    %9 = vector.broadcast %8 : vector<16x1xi1> to vector<16x128xi1>
    %10 = vector.broadcast %cst : f32 to vector<16x128xf32>
    %11 = arith.select %9, %7, %10 : vector<16x128xi1>, vector<16x128xf32>
    %c16_i32_2 = arith.constant 16 : i32
    %12 = arith.addi %0, %c16_i32_2 : i32
    %13 = vector.broadcast %12 : i32 to vector<8x1xi32>
    %14 = arith.addi %13, %2 : vector<8x1xi32>
    %c16_i32_3 = arith.constant 16 : i32
    %15 = vector.broadcast %c16_i32_3 : i32 to vector<8x1xi32>
    %16 = arith.cmpi slt, %14, %15 : vector<8x1xi32>
    %c0_4 = arith.constant 0 : index
    %c0_5 = arith.constant 0 : index
    %17 = vector.load %arg4[%c0_4, %c0_5] : memref<8x128xf32, #tpu.memory_space<vmem>>, vector<8x128xf32>
    %cst_6 = arith.constant 0.000000e+00 : f32
    %18 = vector.shape_cast %16 : vector<8x1xi1> to vector<8x1xi1>
    %19 = vector.broadcast %18 : vector<8x1xi1> to vector<8x128xi1>
    %20 = vector.broadcast %cst_6 : f32 to vector<8x128xf32>
    %21 = arith.select %19, %17, %20 : vector<8x128xi1>, vector<8x128xf32>
    %22 = tpu.concatenate %11, %21 in 0 : vector<16x128xf32>, vector<8x128xf32> -> vector<24x128xf32>
    %c0_7 = arith.constant 0 : index
    %c0_8 = arith.constant 0 : index
    %23 = vector.load %arg2[%c0_7, %c0_8] : memref<7x128xf32, #tpu.memory_space<vmem>>, vector<7x128xf32>
    %24 = vector.extract_strided_slice %23 {offsets = [0, 0], sizes = [1, 128], strides = [1, 1]} : vector<7x128xf32> to vector<1x128xf32>
    %25 = vector.extract_strided_slice %22 {offsets = [0, 0], sizes = [16, 128], strides = [1, 1]} : vector<24x128xf32> to vector<16x128xf32>
    %26 = vector.broadcast %24 : vector<1x128xf32> to vector<16x128xf32>
    %27 = arith.mulf %26, %25 : vector<16x128xf32>
    %28 = vector.extract_strided_slice %23 {offsets = [1, 0], sizes = [1, 128], strides = [1, 1]} : vector<7x128xf32> to vector<1x128xf32>
    %29 = vector.extract_strided_slice %22 {offsets = [1, 0], sizes = [16, 128], strides = [1, 1]} : vector<24x128xf32> to vector<16x128xf32>
    %30 = vector.broadcast %28 : vector<1x128xf32> to vector<16x128xf32>
    %31 = arith.mulf %30, %29 : vector<16x128xf32>
    %32 = arith.addf %27, %31 : vector<16x128xf32>
    %33 = vector.extract_strided_slice %23 {offsets = [2, 0], sizes = [1, 128], strides = [1, 1]} : vector<7x128xf32> to vector<1x128xf32>
    %34 = vector.extract_strided_slice %22 {offsets = [2, 0], sizes = [16, 128], strides = [1, 1]} : vector<24x128xf32> to vector<16x128xf32>
    %35 = vector.broadcast %33 : vector<1x128xf32> to vector<16x128xf32>
    %36 = arith.mulf %35, %34 : vector<16x128xf32>
    %37 = arith.addf %32, %36 : vector<16x128xf32>
    %38 = vector.extract_strided_slice %23 {offsets = [3, 0], sizes = [1, 128], strides = [1, 1]} : vector<7x128xf32> to vector<1x128xf32>
    %39 = vector.extract_strided_slice %22 {offsets = [3, 0], sizes = [16, 128], strides = [1, 1]} : vector<24x128xf32> to vector<16x128xf32>
    %40 = vector.broadcast %38 : vector<1x128xf32> to vector<16x128xf32>
    %41 = arith.mulf %40, %39 : vector<16x128xf32>
    %42 = arith.addf %37, %41 : vector<16x128xf32>
    %43 = vector.extract_strided_slice %23 {offsets = [4, 0], sizes = [1, 128], strides = [1, 1]} : vector<7x128xf32> to vector<1x128xf32>
    %44 = vector.extract_strided_slice %22 {offsets = [4, 0], sizes = [16, 128], strides = [1, 1]} : vector<24x128xf32> to vector<16x128xf32>
    %45 = vector.broadcast %43 : vector<1x128xf32> to vector<16x128xf32>
    %46 = arith.mulf %45, %44 : vector<16x128xf32>
    %47 = arith.addf %42, %46 : vector<16x128xf32>
    %48 = vector.extract_strided_slice %23 {offsets = [5, 0], sizes = [1, 128], strides = [1, 1]} : vector<7x128xf32> to vector<1x128xf32>
    %49 = vector.extract_strided_slice %22 {offsets = [5, 0], sizes = [16, 128], strides = [1, 1]} : vector<24x128xf32> to vector<16x128xf32>
    %50 = vector.broadcast %48 : vector<1x128xf32> to vector<16x128xf32>
    %51 = arith.mulf %50, %49 : vector<16x128xf32>
    %52 = arith.addf %47, %51 : vector<16x128xf32>
    %53 = vector.extract_strided_slice %23 {offsets = [6, 0], sizes = [1, 128], strides = [1, 1]} : vector<7x128xf32> to vector<1x128xf32>
    %54 = vector.extract_strided_slice %22 {offsets = [6, 0], sizes = [16, 128], strides = [1, 1]} : vector<24x128xf32> to vector<16x128xf32>
    %55 = vector.broadcast %53 : vector<1x128xf32> to vector<16x128xf32>
    %56 = arith.mulf %55, %54 : vector<16x128xf32>
    %57 = arith.addf %52, %56 : vector<16x128xf32>
    %c0_9 = arith.constant 0 : index
    %c0_10 = arith.constant 0 : index
    %58 = vector.load %arg5[%c0_9, %c0_10] : memref<16x128xf32, #tpu.memory_space<vmem>>, vector<16x128xf32>
    tpu.vector_store %arg5[%c0_9, %c0_10], %57 {strides = array<i32>} : memref<16x128xf32, #tpu.memory_space<vmem>>, vector<16x128xf32>,
    return
  }
  func.func @transform_0(%arg0: i32, %arg1: i32) -> (i32, i32) {
    %c0_i32 = arith.constant 0 : i32
    %c0_i32_0 = arith.constant 0 : i32
    return %c0_i32, %arg1 : i32, i32
  }
  func.func @transform_1(%arg0: i32, %arg1: i32) -> (i32, i32) {
    %c0_i32 = arith.constant 0 : i32
    return %arg0, %arg1 : i32, i32
  }
  func.func @transform_2(%arg0: i32, %arg1: i32) -> (i32, i32) {
    %c1_i32 = arith.constant 1 : i32
    %0 = arith.addi %arg0, %c1_i32 : i32
    %c2_i32 = arith.constant 2 : i32
    %1 = arith.muli %0, %c2_i32 : i32
    %c1_i32_0 = arith.constant 1 : i32
    %2 = arith.minsi %1, %c1_i32_0 : i32
    %c0_i32 = arith.constant 0 : i32
    return %2, %arg1 : i32, i32
  }
  func.func @transform_3(%arg0: i32, %arg1: i32) -> (i32, i32) {
    %c0_i32 = arith.constant 0 : i32
    return %arg0, %arg1 : i32, i32
  }
}

</mosaic_0001>

<llo_original>
// kernel: tpu_custom_call.1
$region0: #{tpu_custom_call.1}
  #allocation0 [shape = 'u32[]', space=smem, size = 0x4, offset = 0x4, fixed_abs, tag = 'smem constant byte address 0x4 - core index']
  #allocation1 [shape = 'u32[144,128]{1,0:T(1,128)}', space=vmem, size = 0x12000, scoped, tag = 'internal scratch']
  %s0 = inlined_call_operand.hbm [shape: f32[7,128], index: 0, kind: input, shape index: {}]
  %s1 = inlined_call_operand.hbm [shape: f32[16,128], index: 1, kind: input, shape index: {}]
  %s2 = inlined_call_operand.hbm [shape: f32[16,128], index: 2, kind: input, shape index: {}]
  %s3 = inlined_call_operand.hbm [shape: f32[16,128], index: 3, kind: output, shape index: {}]
  %s4 = sld [smem:[#allocation0]]
  $region34: #{tpu_custom_call.1} parent=0
    _
  %s6 = ssub.s32 1, %s4
  %s7 = scalar_select 0, %s6, %s4
  $region1: #{tpu_custom_call.1} parent=0
    #allocation2 [shape = 'u8[4096]{0}', space=vmem, size = 0x1000, scoped, tag = 'input window, operand 0, single buffered']
    #allocation3 [shape = 's32[1]{0}', space=sflag, size = 0x4, scoped, tag = 'scoped memory for tpu_custom_call.1']
    #allocation4 [shape = 's32[1]{0}', space=sflag, size = 0x4, scoped, tag = 'scoped memory for tpu_custom_call.1']
    #allocation5 [shape = 'u8[8192]{0}', space=vmem, size = 0x2000, scoped, tag = 'input window, operand 1, single buffered']
    #allocation6 [shape = 's32[1]{0}', space=sflag, size = 0x4, scoped, tag = 'scoped memory for tpu_custom_call.1']
    #allocation7 [shape = 'u8[4096]{0}', space=vmem, size = 0x1000, scoped, tag = 'input window, operand 2, single buffered']
    #allocation8 [shape = 'u8[8192]{0}', space=vmem, size = 0x2000, scoped, tag = 'output window, operand 0, single buffered']
    %8 = vsyncpa [#allocation3], 0
    %9 = vsyncpa [#allocation6], 0
    %10 = vsyncpa [#allocation4], 0
    // Predicated region
    $region2: #{tpu_custom_call.1} parent=1 // pred_check
      _
    $region3: #{tpu_custom_call.1} parent=1 // pred_check_branch
      %12 = sbr.rel (0) target = $region5
    $region4: #{tpu_custom_call.1} parent=1 // pred_region
      %s14 = ssub.s32 128, 128
      %15 = vsyncadd [#allocation3], %s14
      %s17 = sshll.u32 [#allocation2], 4
      %s18 = int_to_ptr.vmem [resolvable:$true] %s17
      %20 = dma.hbm_to_vmem [thread:$0]  %s0, 128, %s18, [#allocation3]
    $region5: #{tpu_custom_call.1} parent=1 // pred_fallthru
      _
    // Predicated region
    $region6: #{tpu_custom_call.1} parent=1 // pred_check
      _
    $region7: #{tpu_custom_call.1} parent=1 // pred_check_branch
      %22 = sbr.rel (0) target = $region9
    $region8: #{tpu_custom_call.1} parent=1 // pred_region
      %s24 = ssub.s32 256, 256
      %25 = vsyncadd [#allocation6], %s24
      %s26 = sshll.u32 [#allocation5], 4
      %s27 = int_to_ptr.vmem [resolvable:$true] %s26
      %32 = dma.hbm_to_vmem [thread:$0]  %s1, 256, %s27, [#allocation6], 128, 128, 8
    $region9: #{tpu_custom_call.1} parent=1 // pred_fallthru
      _
    // Predicated region
    $region10: #{tpu_custom_call.1} parent=1 // pred_check
      _
    $region11: #{tpu_custom_call.1} parent=1 // pred_check_branch
      %34 = sbr.rel (0) target = $region13
    $region12: #{tpu_custom_call.1} parent=1 // pred_region
      %s35 = sadd.s32 0, 1
      %s36 = smul.u32 %s35, 2
      %p37 = scmp.lt.s32.totalorder %s36, 1
      %s38 = scalar_select %p37, %s36, 1
      %s40 = ssub.s32 128, 128
      %41 = vsyncadd [#allocation6], %s40
      %s42 = smul.addr %s38, 128
      %s43 = scalar_lea.hbm %s2, %s42
      %s45 = sshll.u32 [#allocation7], 4
      %s46 = int_to_ptr.vmem [resolvable:$true] %s45
      %48 = dma.hbm_to_vmem [thread:$0]  %s43, 128, %s46, [#allocation6]
    $region13: #{tpu_custom_call.1} parent=1 // pred_fallthru
      _
    // Predicated region
    $region14: #{tpu_custom_call.1} parent=1 // pred_check
      _
    $region15: #{tpu_custom_call.1} parent=1 // pred_check_branch
      %50 = sbr.rel (0) target = $region17
    $region16: #{tpu_custom_call.1} parent=1 // pred_region
      %51 = dma.done [#allocation3], 128
    $region17: #{tpu_custom_call.1} parent=1 // pred_fallthru
      _
    // Predicated region
    $region18: #{tpu_custom_call.1} parent=1 // pred_check
      _
    $region19: #{tpu_custom_call.1} parent=1 // pred_check_branch
      %53 = sbr.rel (0) target = $region21
    $region20: #{tpu_custom_call.1} parent=1 // pred_region
      %54 = dma.done [#allocation6], 256
    $region21: #{tpu_custom_call.1} parent=1 // pred_fallthru
      _
    // Predicated region
    $region22: #{tpu_custom_call.1} parent=1 // pred_check
      _
    $region23: #{tpu_custom_call.1} parent=1 // pred_check_branch
      %56 = sbr.rel (0) target = $region25
    $region24: #{tpu_custom_call.1} parent=1 // pred_region
      %57 = dma.done [#allocation6], 128
    $region25: #{tpu_custom_call.1} parent=1 // pred_fallthru
      _
    %s58 = sadd.s32 0, 1
    %s59 = smul.u32 %s58, 2
    %p60 = scmp.lt.s32.totalorder %s59, 1
    %s61 = scalar_select %p60, %s59, 1
    %s62 = smul.u32 0, 16
    %v63 = vlaneseq
    %v64 = vshrl.u32 %v63, 7
    %v65 = vadd.s32 %v64, 8
    %v66 = vstv %s62
    %v67 = vadd.s32 %v66, %v64
    %v68 = vadd.s32 %v66, %v65
    %vm69 = vcmp.lt.s32.totalorder %v67, 16
    %vm70 = vcmp.lt.s32.totalorder %v68, 16
    %v71 = vld [vmem:[#allocation5] sm:$0xff]
    %v72 = vld [vmem:[#allocation5 + $0x8] sm:$0xff]
    %v73 = vsel %vm69, 1, 0
    %v74 = vsel %vm70, 1, 0
    %vm75 = vcmp.eq.s32.totalorder %v73, 1
    %vm76 = vcmp.eq.s32.totalorder %v74, 1
    %v77 = vsel %vm75, %v71, 0.0
    %v78 = vsel %vm76, %v72, 0.0
    %s79 = sadd.s32 %s62, 16
    %v80 = vstv %s79
    %v81 = vadd.s32 %v80, %v64
    %vm82 = vcmp.lt.s32.totalorder %v81, 16
    %v83 = vld [vmem:[#allocation7] sm:$0xff]
    %v84 = vsel %vm82, 1, 0
    %vm85 = vcmp.eq.s32.totalorder %v84, 1
    %v86 = vsel %vm85, %v83, 0.0
    %v87 = vld [vmem:[#allocation2] sm:$0x7f]
    %v88 = vlaneseq
    %v89 = vshrl.u32 %v88, 7
    %v90 = vsub.s32 0, %v89
    %v91 = vrot.slane %v87, %v90
    %v92 = vmul.f32 %v91, %v77
    %v93 = vmul.f32 %v91, %v78
    %v94 = vlaneseq
    %v95 = vshrl.u32 %v94, 7
    %v96 = vsub.s32 1, %v95
    %v97 = vrot.slane %v87, %v96
    %v98 = vmul.f32 %v97, %v77
    %v99 = vmul.f32 %v97, %v78
    %v100 = vmul.f32 %v97, %v86
    %vm104 = vcmask 1046528
    %v105 = vrot.slane %v98, 1
    %v106 = vrot.slane %v99, 1
    %v107 = vsel %vm104, %v105, %v106
    %v108 = vrot.slane %v100, 1
    %v109 = vsel %vm104, %v106, %v108
    %v112 = vadd.f32 %v92, %v107
    %v113 = vadd.f32 %v93, %v109
    %v114 = vlaneseq
    %v115 = vshrl.u32 %v114, 7
    %v116 = vsub.s32 2, %v115
    %v117 = vrot.slane %v87, %v116
    %v118 = vmul.f32 %v117, %v77
    %v119 = vmul.f32 %v117, %v78
    %v120 = vmul.f32 %v117, %v86
    %vm124 = vcmask 1045504
    %v125 = vrot.slane %v118, 2
    %v126 = vrot.slane %v119, 2
    %v127 = vsel %vm124, %v125, %v126
    %v128 = vrot.slane %v120, 2
    %v129 = vsel %vm124, %v126, %v128
    %v132 = vadd.f32 %v112, %v127
    %v133 = vadd.f32 %v113, %v129
    %v134 = vlaneseq
    %v135 = vshrl.u32 %v134, 7
    %v136 = vsub.s32 3, %v135
    %v137 = vrot.slane %v87, %v136
    %v138 = vmul.f32 %v137, %v77
    %v139 = vmul.f32 %v137, %v78
    %v140 = vmul.f32 %v137, %v86
    %vm144 = vcmask 1044480
    %v145 = vrot.slane %v138, 3
    %v146 = vrot.slane %v139, 3
    %v147 = vsel %vm144, %v145, %v146
    %v148 = vrot.slane %v140, 3
    %v149 = vsel %vm144, %v146, %v148
    %v152 = vadd.f32 %v132, %v147
    %v153 = vadd.f32 %v133, %v149
    %v154 = vlaneseq
    %v155 = vshrl.u32 %v154, 7
    %v156 = vsub.s32 4, %v155
    %v157 = vrot.slane %v87, %v156
    %v158 = vmul.f32 %v157, %v77
    %v159 = vmul.f32 %v157, %v78
    %v160 = vmul.f32 %v157, %v86
    %vm164 = vcmask 1043456
    %v165 = vrot.slane %v158, 4
    %v166 = vrot.slane %v159, 4
    %v167 = vsel %vm164, %v165, %v166
    %v168 = vrot.slane %v160, 4
    %v169 = vsel %vm164, %v166, %v168
    %v172 = vadd.f32 %v152, %v167
    %v173 = vadd.f32 %v153, %v169
    %v174 = vlaneseq
    %v175 = vshrl.u32 %v174, 7
    %v176 = vsub.s32 5, %v175
    %v177 = vrot.slane %v87, %v176
    %v178 = vmul.f32 %v177, %v77
    %v179 = vmul.f32 %v177, %v78
    %v180 = vmul.f32 %v177, %v86
    %vm184 = vcmask 1042432
    %v185 = vrot.slane %v178, 5
    %v186 = vrot.slane %v179, 5
    %v187 = vsel %vm184, %v185, %v186
    %v188 = vrot.slane %v180, 5
    %v189 = vsel %vm184, %v186, %v188
    %v192 = vadd.f32 %v172, %v187
    %v193 = vadd.f32 %v173, %v189
    %v194 = vlaneseq
    %v195 = vshrl.u32 %v194, 7
    %v196 = vsub.s32 6, %v195
    %v197 = vrot.slane %v87, %v196
    %v198 = vmul.f32 %v197, %v77
    %v199 = vmul.f32 %v197, %v78
    %v200 = vmul.f32 %v197, %v86
    %vm204 = vcmask 1041408
    %v205 = vrot.slane %v198, 6
    %v206 = vrot.slane %v199, 6
    %v207 = vsel %vm204, %v205, %v206
    %v208 = vrot.slane %v200, 6
    %v209 = vsel %vm204, %v206, %v208
    %v212 = vadd.f32 %v192, %v207
    %v213 = vadd.f32 %v193, %v209
    %214 = vst [vmem:[#allocation8] sm:$0xff] %v212
    %215 = vst [vmem:[#allocation8 + $0x8] sm:$0xff] %v213
    // Predicated region
    $region26: #{tpu_custom_call.1} parent=1 // pred_check
      _
    $region27: #{tpu_custom_call.1} parent=1 // pred_check_branch
      %217 = sbr.rel (0) target = $region29
    $region28: #{tpu_custom_call.1} parent=1 // pred_region
      %s219 = ssub.s32 256, 256
      %220 = vsyncadd [#allocation4], %s219
      %s221 = sshll.u32 [#allocation8], 4
      %s222 = int_to_ptr.vmem [resolvable:$true] %s221
      %227 = dma.vmem_to_hbm [thread:$0]  %s222, 256, %s3, [#allocation4], 128, 128, 8
    $region29: #{tpu_custom_call.1} parent=1 // pred_fallthru
      _
    // Predicated region
    $region30: #{tpu_custom_call.1} parent=1 // pred_check
      _
    $region31: #{tpu_custom_call.1} parent=1 // pred_check_branch
      %229 = sbr.rel (0) target = $region33
    $region32: #{tpu_custom_call.1} parent=1 // pred_region
      %230 = dma.done [#allocation4], 256
    $region33: #{tpu_custom_call.1} parent=1 // pred_fallthru
      _
    %231 = vsyncpa [#allocation3], 1
    %232 = vsyncpa [#allocation6], 1
    %233 = vsyncpa [#allocation4], 1

</llo_original>
